<compile_context>
chip_gen: v7x
topology: tpu7x:2x2x1
jax: 0.10.0
libtpu: 0.0.40
codegen_flags: <defaults>
</compile_context>

<pallas_src>
import functools

import jax
import jax.numpy as jnp
from jax.experimental import pallas as pl
from jax.experimental.pallas import tpu as pltpu


def _round_up(x, m):
    return ((x + m - 1) // m) * m


def _choose_tm(n, tm_max):
    """Row-tile size: multiple of 128, capped at tm_max, and guaranteeing
    >= 2 grid steps once N > 128 so v7x megacore can split the grid."""
    if n <= 128:
        return 128
    two_tiles = _round_up(-(-n // 2), 128)       # ceil(n/2) rounded up to 128
    return max(128, min(tm_max, two_tiles))


def _mlp_mse_kernel(z_ref, t_ref, w1_ref, b1_ref, w2_ref, b2_ref,
                    w3_ref, b3_ref, sse_ref, *, tm, n_valid):
    # RevGrad: identity in the forward pass.
    x = z_ref[...].astype(jnp.bfloat16)                               # (TM, D)

    # Layer 1: Linear(D -> H) + ReLU.  bf16 MXU operands, f32 accumulate.
    # K = D (e.g. 32) is a structural MXU-occupancy ceiling; tiling cannot
    # recover it, so the matmul stays as-is.
    h1 = jnp.dot(x, w1_ref[...], preferred_element_type=jnp.float32)
    h1 = jnp.maximum(h1 + b1_ref[...], 0.0)                           # (TM, H) f32

    # Layer 2: Linear(H -> H) + ReLU (dominant MXU cost).
    h2 = jnp.dot(h1.astype(jnp.bfloat16), w2_ref[...],
                 preferred_element_type=jnp.float32)
    h2 = jnp.maximum(h2 + b2_ref[...], 0.0)                           # (TM, H) f32

    # Layer 3: Linear(H -> 1), computed directly into a lane-dense (1, TM) row
    # by contracting the last dims (w3 is an (8, H) row-replicated slab so the
    # MXU M dim is tile aligned; rows 1..7 are discarded).
    p = jnp.einsum("oh,mh->om", w3_ref[...], h2.astype(jnp.bfloat16),
                   preferred_element_type=jnp.float32)                # (8, TM)
    pred = p[0:1, :] + b3_ref[...]                                    # (1, TM)

    diff = pred - t_ref[...]                                          # (1, TM)

    last = pl.num_programs(0) - 1
    if n_valid % tm != 0:
        # Ragged last tile: columns >= n_valid carry unspecified data (the z /
        # targets blocks read past the end of the arrays); the select keeps
        # any NaN/Inf there out of the loss.
        @pl.when(pl.program_id(0) == last)
        def _():
            col = last * tm + jax.lax.broadcasted_iota(jnp.int32, (1, tm), 1)
            d = jnp.where(col < n_valid, diff, 0.0)
            sse_ref[...] = jnp.sum(d * d).reshape(1, 1)

        @pl.when(pl.program_id(0) != last)
        def _():
            sse_ref[...] = jnp.sum(diff * diff).reshape(1, 1)
    else:
        sse_ref[...] = jnp.sum(diff * diff).reshape(1, 1)


def inverse_grad_1d_predictor_loss(z, targets, params, *, tm=2048):
    """Forward pass of InverseGrad1DPredictor.

    z:       (B, T, input_dim)
    targets: (B, T)
    params:  dict with w1 (D,H), b1 (1,H), w2 (H,H), b2 (1,H), w3 (1,H), b3 (1,1)
    returns: scalar f32 loss

    Note: the loss is a sum of per-tile partial SSEs divided by N, and the
    matmul operands are bf16 (f32 accumulation), so the summation order /
    rounding differs slightly from a pure-f32 reference (rtol ~3e-2).
    """
    B, T, D = z.shape
    N = B * T
    H = params["w1"].shape[1]

    tm_eff = _choose_tm(N, tm)
    num_tiles = pl.cdiv(N, tm_eff)

    z_flat = z.reshape(N, D)                                 # no pad, no copy
    t_row = targets.reshape(1, N).astype(jnp.float32)        # lane-dense stream

    w3_slab = jnp.tile(params["w3"].astype(jnp.bfloat16), (8, 1))   # (8, H)

    kernel = functools.partial(_mlp_mse_kernel, tm=tm_eff, n_valid=N)

    partial_sse = pl.pallas_call(
        kernel,
        out_shape=jax.ShapeDtypeStruct((num_tiles, 1), jnp.float32),
        grid=(num_tiles,),
        in_specs=[
            pl.BlockSpec((tm_eff, D), lambda i: (i, 0)),   # z rows (streamed, ragged last)
            pl.BlockSpec((1, tm_eff), lambda i: (0, i)),   # targets (lane-dense stream)
            pl.BlockSpec((D, H), lambda i: (0, 0)),        # w1 (VMEM-resident)
            pl.BlockSpec((1, H), lambda i: (0, 0)),        # b1 (resident)
            pl.BlockSpec((H, H), lambda i: (0, 0)),        # w2 (resident)
            pl.BlockSpec((1, H), lambda i: (0, 0)),        # b2 (resident)
            pl.BlockSpec((8, H), lambda i: (0, 0)),        # w3 slab (resident)
            pl.BlockSpec((1, 1), lambda i: (0, 0)),        # b3 (resident)
        ],
        out_specs=pl.BlockSpec((1, 1), lambda i: (i, 0)),  # per-tile partial SSE
        compiler_params=pltpu.CompilerParams(
            dimension_semantics=("parallel",),
            vmem_limit_bytes=32 * 1024 * 1024),
    )(z_flat, t_row,
      params["w1"].astype(jnp.bfloat16), params["b1"].astype(jnp.float32),
      params["w2"].astype(jnp.bfloat16), params["b2"].astype(jnp.float32),
      w3_slab, params["b3"].astype(jnp.float32))

    return jnp.sum(partial_sse) / N


def init_params(key, input_dim, hidden_dim):
    """Deterministic synthetic parameters (shapes match the nn.Linear layers).

    Weights are stored as (in_features, out_features), i.e. transposed vs.
    PyTorch's (out_features, in_features).
    """
    k1, k2, k3, k4, k5, k6 = jax.random.split(key, 6)
    s1 = 1.0 / jnp.sqrt(input_dim)
    s2 = 1.0 / jnp.sqrt(hidden_dim)
    return {
        "w1": jax.random.uniform(k1, (input_dim, hidden_dim), jnp.float32, -s1, s1),
        "b1": jax.random.uniform(k2, (1, hidden_dim), jnp.float32, -s1, s1),
        "w2": jax.random.uniform(k3, (hidden_dim, hidden_dim), jnp.float32, -s2, s2),
        "b2": jax.random.uniform(k4, (1, hidden_dim), jnp.float32, -s2, s2),
        # final Linear(hidden, 1): weight kept as a (1, hidden) row
        "w3": jax.random.uniform(k5, (1, hidden_dim), jnp.float32, -s2, s2),
        "b3": jax.random.uniform(k6, (1, 1), jnp.float32, -s2, s2),
    }


def _reference_loss(z, targets, params):
    # Pure-JAX f32 reference for sanity checking.
    B, T, D = z.shape
    x = z.reshape(B * T, D)
    h1 = jnp.maximum(x @ params["w1"] + params["b1"], 0.0)
    h2 = jnp.maximum(h1 @ params["w2"] + params["b2"], 0.0)
    pred = (h2 * params["w3"]).sum(-1) + params["b3"][0, 0]
    return jnp.mean((pred - targets.reshape(-1)) ** 2)


if __name__ == "__main__":
    input_dim = 32
    hidden_dim = 256     # module default

    key = jax.random.PRNGKey(0)
    kz, kt, kz2, kt2, kp = jax.random.split(key, 5)
    params = init_params(kp, input_dim, hidden_dim)

    # Case 1: tiny single-tile ragged case (B=2, T=8 -> N=16 rows in one
    # 128-row tile; exercises the masked epilogue).
    B, T = 2, 8
    z = jax.random.normal(kz, (B, T, input_dim), jnp.float32)
    targets = jax.random.normal(kt, (B, T), jnp.float32)
    loss = jax.block_until_ready(inverse_grad_1d_predictor_loss(z, targets, params))
    ref = _reference_loss(z, targets, params)
    assert jnp.allclose(loss, ref, rtol=3e-2, atol=1e-3), (loss, ref)

    # Case 2: multi-tile + ragged last tile (N=400 -> two 256-row tiles, the
    # second only 144 rows valid); also the v7x megacore split path.
    B2, T2 = 2, 200
    z2 = jax.random.normal(kz2, (B2, T2, input_dim), jnp.float32)
    targets2 = jax.random.normal(kt2, (B2, T2), jnp.float32)
    loss2 = jax.block_until_ready(inverse_grad_1d_predictor_loss(z2, targets2, params))
    ref2 = _reference_loss(z2, targets2, params)
    assert jnp.allclose(loss2, ref2, rtol=3e-2, atol=1e-3), (loss2, ref2)

    print("KERNEL_OK")
</pallas_src>

<mosaic_0001>
module attributes {stable_mosaic.version = 11 : i64} {
  func.func @_mlp_mse_kernel(%arg0: i32, %arg1: memref<128x32xf32, #tpu.memory_space<vmem>>, %arg2: memref<1x128xf32, #tpu.memory_space<vmem>>, %arg3: memref<32x256xbf16, #tpu.memory_space<vmem>>, %arg4: memref<1x256xf32, #tpu.memory_space<vmem>>, %arg5: memref<256x256xbf16, #tpu.memory_space<vmem>>, %arg6: memref<1x256xf32, #tpu.memory_space<vmem>>, %arg7: memref<8x256xbf16, #tpu.memory_space<vmem>>, %arg8: memref<1x1xf32, #tpu.memory_space<vmem>>, %arg9: memref<1x1xf32, #tpu.memory_space<vmem>>) attributes {dimension_semantics = [#tpu.dimension_semantics<parallel>], iteration_bounds = array<i64: 1>, scalar_prefetch = 0 : i64, scratch_operands = 0 : i64, tpu.core_type = #tpu.core_type<tc>, window_params = [{transform_indices = @transform_0, window_bounds = array<i64: 128, 32>}, {transform_indices = @transform_1, window_bounds = array<i64: 1, 128>}, {pipeline_mode = #tpu.pipeline_mode<synchronous>, transform_indices = @transform_2, window_bounds = array<i64: 32, 256>}, {pipeline_mode = #tpu.pipeline_mode<synchronous>, transform_indices = @transform_3, window_bounds = array<i64: 1, 256>}, {pipeline_mode = #tpu.pipeline_mode<synchronous>, transform_indices = @transform_4, window_bounds = array<i64: 256, 256>}, {pipeline_mode = #tpu.pipeline_mode<synchronous>, transform_indices = @transform_5, window_bounds = array<i64: 1, 256>}, {pipeline_mode = #tpu.pipeline_mode<synchronous>, transform_indices = @transform_6, window_bounds = array<i64: 8, 256>}, {pipeline_mode = #tpu.pipeline_mode<synchronous>, transform_indices = @transform_7, window_bounds = array<i64: 1, 1>}, {transform_indices = @transform_8, window_bounds = array<i64: 1, 1>}]} {
    %c0 = arith.constant 0 : index
    %c0_0 = arith.constant 0 : index
    %0 = vector.load %arg1[%c0, %c0_0] : memref<128x32xf32, #tpu.memory_space<vmem>>, vector<128x32xf32>
    %1 = arith.truncf %0 : vector<128x32xf32> to vector<128x32xbf16>
    %c0_1 = arith.constant 0 : index
    %c0_2 = arith.constant 0 : index
    %2 = vector.load %arg3[%c0_1, %c0_2] : memref<32x256xbf16, #tpu.memory_space<vmem>>, vector<32x256xbf16>
    %cst = arith.constant dense<0.000000e+00> : vector<128x256xf32>
    %3 = tpu.matmul %1, %2, %cst {dimension_numbers = #tpu.dot_dimension_numbers<[1], [0], [0], [1], [0, 0, 1, 1], [], []>} : vector<128x32xbf16>, vector<32x256xbf16>, vector<128x256xf32> -> vector<128x256xf32>
    %c0_3 = arith.constant 0 : index
    %c0_4 = arith.constant 0 : index
    %4 = vector.load %arg4[%c0_3, %c0_4] : memref<1x256xf32, #tpu.memory_space<vmem>>, vector<1x256xf32>
    %5 = vector.broadcast %4 : vector<1x256xf32> to vector<128x256xf32>
    %6 = arith.addf %3, %5 : vector<128x256xf32>
    %cst_5 = arith.constant 0.000000e+00 : f32
    %7 = vector.broadcast %cst_5 : f32 to vector<128x256xf32>
    %8 = arith.maximumf %6, %7 : vector<128x256xf32>
    %9 = arith.truncf %8 : vector<128x256xf32> to vector<128x256xbf16>
    %c0_6 = arith.constant 0 : index
    %c0_7 = arith.constant 0 : index
    %10 = vector.load %arg5[%c0_6, %c0_7] : memref<256x256xbf16, #tpu.memory_space<vmem>>, vector<256x256xbf16>
    %cst_8 = arith.constant dense<0.000000e+00> : vector<128x256xf32>
    %11 = tpu.matmul %9, %10, %cst_8 {dimension_numbers = #tpu.dot_dimension_numbers<[1], [0], [0], [1], [0, 0, 1, 1], [], []>} : vector<128x256xbf16>, vector<256x256xbf16>, vector<128x256xf32> -> vector<128x256xf32>
    %c0_9 = arith.constant 0 : index
    %c0_10 = arith.constant 0 : index
    %12 = vector.load %arg6[%c0_9, %c0_10] : memref<1x256xf32, #tpu.memory_space<vmem>>, vector<1x256xf32>
    %13 = vector.broadcast %12 : vector<1x256xf32> to vector<128x256xf32>
    %14 = arith.addf %11, %13 : vector<128x256xf32>
    %cst_11 = arith.constant 0.000000e+00 : f32
    %15 = vector.broadcast %cst_11 : f32 to vector<128x256xf32>
    %16 = arith.maximumf %14, %15 : vector<128x256xf32>
    %c0_12 = arith.constant 0 : index
    %c0_13 = arith.constant 0 : index
    %17 = vector.load %arg7[%c0_12, %c0_13] : memref<8x256xbf16, #tpu.memory_space<vmem>>, vector<8x256xbf16>
    %18 = arith.truncf %16 : vector<128x256xf32> to vector<128x256xbf16>
    "tpu.trace_start"() <{level = 10 : i32, message = "oh,mh->om"}> : () -> ()
    %cst_14 = arith.constant dense<0.000000e+00> : vector<8x128xf32>
    %19 = tpu.matmul %17, %18, %cst_14 {dimension_numbers = #tpu.dot_dimension_numbers<[1], [1], [0], [0], [0, 0, 1, 0], [], []>} : vector<8x256xbf16>, vector<128x256xbf16>, vector<8x128xf32> -> vector<8x128xf32>
    "tpu.trace_stop"() : () -> ()
    %20 = vector.extract_strided_slice %19 {offsets = [0, 0], sizes = [1, 128], strides = [1, 1]} : vector<8x128xf32> to vector<1x128xf32>
    %c0_15 = arith.constant 0 : index
    %c0_16 = arith.constant 0 : index
    %21 = vector.load %arg8[%c0_15, %c0_16] : memref<1x1xf32, #tpu.memory_space<vmem>>, vector<1x1xf32>
    %22 = vector.broadcast %21 : vector<1x1xf32> to vector<1x128xf32>
    %23 = arith.addf %20, %22 : vector<1x128xf32>
    %c0_17 = arith.constant 0 : index
    %c0_18 = arith.constant 0 : index
    %24 = vector.load %arg2[%c0_17, %c0_18] : memref<1x128xf32, #tpu.memory_space<vmem>>, vector<1x128xf32>
    %25 = arith.subf %23, %24 : vector<1x128xf32>
    %c0_i32 = arith.constant 0 : i32
    %26 = arith.cmpi eq, %arg0, %c0_i32 : i32
    %27 = arith.extui %26 : i1 to i32
    %c0_i32_19 = arith.constant 0 : i32
    %28 = arith.cmpi ne, %27, %c0_i32_19 : i32
    scf.if %28 {
      %32 = tpu.iota {dimensions = array<i32: 1>} : vector<1x128xi32>
      %c0_i32_22 = arith.constant 0 : i32
      %33 = vector.broadcast %c0_i32_22 : i32 to vector<1x128xi32>
      %34 = arith.addi %33, %32 : vector<1x128xi32>
      %c16_i32 = arith.constant 16 : i32
      %35 = vector.broadcast %c16_i32 : i32 to vector<1x128xi32>
      %36 = arith.cmpi slt, %34, %35 : vector<1x128xi32>
      %cst_23 = arith.constant 0.000000e+00 : f32
      %37 = vector.broadcast %cst_23 : f32 to vector<1x128xf32>
      %38 = arith.select %36, %25, %37 : vector<1x128xi1>, vector<1x128xf32>
      %39 = arith.mulf %38, %38 : vector<1x128xf32>
      %40 = vector.shape_cast %39 : vector<1x128xf32> to vector<1x1x128xf32>
      %cst_24 = arith.constant dense<0.000000e+00> : vector<1xf32>
      %41 = vector.multi_reduction <add>, %40, %cst_24 [1, 2] : vector<1x1x128xf32> to vector<1xf32>
      %42 = vector.shape_cast %41 : vector<1xf32> to vector<1x1x1xf32>
      %43 = vector.extract %42[0, 0, 0] : f32 from vector<1x1x1xf32>
      %44 = vector.broadcast %43 : f32 to vector<1x1xf32>
      %c0_25 = arith.constant 0 : index
      %c0_26 = arith.constant 0 : index
      %45 = vector.load %arg9[%c0_25, %c0_26] : memref<1x1xf32, #tpu.memory_space<vmem>>, vector<1x1xf32>
      tpu.vector_store %arg9[%c0_25, %c0_26], %44 {strides = array<i32>} : memref<1x1xf32, #tpu.memory_space<vmem>>, vector<1x1xf32>,
    } else {
    }
    %c0_i32_20 = arith.constant 0 : i32
    %29 = arith.cmpi ne, %arg0, %c0_i32_20 : i32
    %30 = arith.extui %29 : i1 to i32
    %c0_i32_21 = arith.constant 0 : i32
    %31 = arith.cmpi ne, %30, %c0_i32_21 : i32
    scf.if %31 {
      %32 = arith.mulf %25, %25 : vector<1x128xf32>
      %33 = vector.shape_cast %32 : vector<1x128xf32> to vector<1x1x128xf32>
      %cst_22 = arith.constant dense<0.000000e+00> : vector<1xf32>
      %34 = vector.multi_reduction <add>, %33, %cst_22 [1, 2] : vector<1x1x128xf32> to vector<1xf32>
      %35 = vector.shape_cast %34 : vector<1xf32> to vector<1x1x1xf32>
      %36 = vector.extract %35[0, 0, 0] : f32 from vector<1x1x1xf32>
      %37 = vector.broadcast %36 : f32 to vector<1x1xf32>
      %c0_23 = arith.constant 0 : index
      %c0_24 = arith.constant 0 : index
      %38 = vector.load %arg9[%c0_23, %c0_24] : memref<1x1xf32, #tpu.memory_space<vmem>>, vector<1x1xf32>
      tpu.vector_store %arg9[%c0_23, %c0_24], %37 {strides = array<i32>} : memref<1x1xf32, #tpu.memory_space<vmem>>, vector<1x1xf32>,
    } else {
    }
    return
  }
  func.func @transform_0(%arg0: i32) -> (i32, i32) {
    %c0_i32 = arith.constant 0 : i32
    %c0_i32_0 = arith.constant 0 : i32
    return %arg0, %c0_i32 : i32, i32
  }
  func.func @transform_1(%arg0: i32) -> (i32, i32) {
    %c0_i32 = arith.constant 0 : i32
    %c0_i32_0 = arith.constant 0 : i32
    return %c0_i32, %arg0 : i32, i32
  }
  func.func @transform_2(%arg0: i32) -> (i32, i32) {
    %c0_i32 = arith.constant 0 : i32
    %c0_i32_0 = arith.constant 0 : i32
    %c0_i32_1 = arith.constant 0 : i32
    return %c0_i32, %c0_i32_0 : i32, i32
  }
  func.func @transform_3(%arg0: i32) -> (i32, i32) {
    %c0_i32 = arith.constant 0 : i32
    %c0_i32_0 = arith.constant 0 : i32
    %c0_i32_1 = arith.constant 0 : i32
    return %c0_i32, %c0_i32_0 : i32, i32
  }
  func.func @transform_4(%arg0: i32) -> (i32, i32) {
    %c0_i32 = arith.constant 0 : i32
    %c0_i32_0 = arith.constant 0 : i32
    %c0_i32_1 = arith.constant 0 : i32
    return %c0_i32, %c0_i32_0 : i32, i32
  }
  func.func @transform_5(%arg0: i32) -> (i32, i32) {
    %c0_i32 = arith.constant 0 : i32
    %c0_i32_0 = arith.constant 0 : i32
    %c0_i32_1 = arith.constant 0 : i32
    return %c0_i32, %c0_i32_0 : i32, i32
  }
  func.func @transform_6(%arg0: i32) -> (i32, i32) {
    %c0_i32 = arith.constant 0 : i32
    %c0_i32_0 = arith.constant 0 : i32
    %c0_i32_1 = arith.constant 0 : i32
    return %c0_i32, %c0_i32_0 : i32, i32
  }
  func.func @transform_7(%arg0: i32) -> (i32, i32) {
    %c0_i32 = arith.constant 0 : i32
    %c0_i32_0 = arith.constant 0 : i32
    %c0_i32_1 = arith.constant 0 : i32
    return %c0_i32, %c0_i32_0 : i32, i32
  }
  func.func @transform_8(%arg0: i32) -> (i32, i32) {
    %c0_i32 = arith.constant 0 : i32
    %c0_i32_0 = arith.constant 0 : i32
    return %arg0, %c0_i32 : i32, i32
  }
}

</mosaic_0001>

<llo_original>
// kernel: tpu_custom_call.1
$region0: #{tpu_custom_call.1}
  #allocation0 [shape = 'u32[]', space=smem, size = 0x4, offset = 0x4, fixed_abs, tag = 'smem constant byte address 0x4 - core index']
  #allocation1 [shape = 'u32[144,128]{1,0:T(1,128)}', space=vmem, size = 0x12000, scoped, tag = 'internal scratch']
  #allocation2 [shape = 'f32[1,1]{1,0:T(1,128)S(1)}', space=vmem, size = 0x200, scoped, tag = 'scoped memory for tpu_custom_call.1']
  %s0 = inlined_call_operand.hbm [shape: f32[16,32], index: 0, kind: input, shape index: {}]
  %s1 = inlined_call_operand.vmem [shape: f32[1,16], index: 1, kind: input, shape index: {}]
  %s2 = inlined_call_operand.hbm [shape: bf16[32,256], index: 2, kind: input, shape index: {}]
  %s3 = inlined_call_operand.vmem [shape: f32[1,256], index: 3, kind: input, shape index: {}]
  %s4 = inlined_call_operand.hbm [shape: bf16[256,256], index: 4, kind: input, shape index: {}]
  %s5 = inlined_call_operand.vmem [shape: f32[1,256], index: 5, kind: input, shape index: {}]
  %s6 = inlined_call_operand.vmem [shape: bf16[8,256], index: 6, kind: input, shape index: {}]
  %s7 = inlined_call_operand.<no memory space> [shape: f32[1,1], index: 7, kind: input, shape index: {}]
  %s8 = inlined_call_operand.hbm [shape: f32[1,1], index: 8, kind: output, shape index: {}]
  %s9 = sld [smem:[#allocation0]]
  $region62: #{tpu_custom_call.1} parent=0
    _
  %s11 = ssub.s32 1, %s9
  %s12 = scalar_select 0, %s11, %s9
  %v13 = vstv %s7
  %14 = vst [vmem:[#allocation2] sm:$0x1] %v13
  $region1: #{tpu_custom_call.1} parent=0
    #allocation3 [shape = 'u8[65536]{0}', space=vmem, size = 0x10000, scoped, tag = 'input window, operand 0, single buffered']
    #allocation4 [shape = 's32[1]{0}', space=sflag, size = 0x4, scoped, tag = 'scoped memory for tpu_custom_call.1']
    #allocation5 [shape = 's32[1]{0}', space=sflag, size = 0x4, scoped, tag = 'scoped memory for tpu_custom_call.1']
    #allocation6 [shape = 'u8[16384]{0}', space=vmem, size = 0x4000, scoped, tag = 'input window, operand 2, single buffered']
    #allocation7 [shape = 's32[1]{0}', space=sflag, size = 0x4, scoped, tag = 'scoped memory for tpu_custom_call.1']
    #allocation8 [shape = 'u8[131072]{0}', space=vmem, size = 0x20000, scoped, tag = 'input window, operand 4, single buffered']
    #allocation9 [shape = 'u8[512]{0}', space=vmem, size = 0x400, scoped, tag = 'output window, operand 0, single buffered']
    %15 = vsyncpa [#allocation4], 0
    %16 = vsyncpa [#allocation7], 0
    %17 = vsyncpa [#allocation5], 0
    // Predicated region
    $region2: #{tpu_custom_call.1} parent=1 // pred_check
      _
    $region3: #{tpu_custom_call.1} parent=1 // pred_check_branch
      %19 = sbr.rel (0) target = $region5
    $region4: #{tpu_custom_call.1} parent=1 // pred_region
      %s21 = ssub.s32 2048, 256
      %22 = vsyncadd [#allocation4], %s21
      %s23 = sshll.u32 [#allocation3], 4
      %s24 = int_to_ptr.vmem [resolvable:$true] %s23
      %29 = dma.hbm_to_vmem [thread:$0]  %s0, 256, %s24, [#allocation4], 128, 128, 8
    $region5: #{tpu_custom_call.1} parent=1 // pred_fallthru
      _
    // Predicated region
    $region6: #{tpu_custom_call.1} parent=1 // pred_check
      _
    $region7: #{tpu_custom_call.1} parent=1 // pred_check_branch
      %31 = sbr.rel (0) target = $region9
    $region8: #{tpu_custom_call.1} parent=1 // pred_region
      _
    $region9: #{tpu_custom_call.1} parent=1 // pred_fallthru
      _
    // Predicated region
    $region10: #{tpu_custom_call.1} parent=1 // pred_check
      _
    $region11: #{tpu_custom_call.1} parent=1 // pred_check_branch
      %33 = sbr.rel (0) target = $region13
    $region12: #{tpu_custom_call.1} parent=1 // pred_region
      %s35 = ssub.s32 512, 512
      %36 = vsyncadd [#allocation7], %s35
      %s37 = sshll.u32 [#allocation6], 4
      %s38 = int_to_ptr.vmem [resolvable:$true] %s37
      %43 = dma.hbm_to_vmem [thread:$0]  %s2, 512, %s38, [#allocation7], 128, 128, 8
    $region13: #{tpu_custom_call.1} parent=1 // pred_fallthru
      _
    // Predicated region
    $region14: #{tpu_custom_call.1} parent=1 // pred_check
      _
    $region15: #{tpu_custom_call.1} parent=1 // pred_check_branch
      %45 = sbr.rel (0) target = $region17
    $region16: #{tpu_custom_call.1} parent=1 // pred_region
      _
    $region17: #{tpu_custom_call.1} parent=1 // pred_fallthru
      _
    // Predicated region
    $region18: #{tpu_custom_call.1} parent=1 // pred_check
      _
    $region19: #{tpu_custom_call.1} parent=1 // pred_check_branch
      %47 = sbr.rel (0) target = $region21
    $region20: #{tpu_custom_call.1} parent=1 // pred_region
      %s49 = ssub.s32 4096, 4096
      %50 = vsyncadd [#allocation7], %s49
      %s51 = sshll.u32 [#allocation8], 4
      %s52 = int_to_ptr.vmem [resolvable:$true] %s51
      %57 = dma.hbm_to_vmem [thread:$0]  %s4, 4096, %s52, [#allocation7], 128, 128, 8
    $region21: #{tpu_custom_call.1} parent=1 // pred_fallthru
      _
    // Predicated region
    $region22: #{tpu_custom_call.1} parent=1 // pred_check
      _
    $region23: #{tpu_custom_call.1} parent=1 // pred_check_branch
      %59 = sbr.rel (0) target = $region25
    $region24: #{tpu_custom_call.1} parent=1 // pred_region
      _
    $region25: #{tpu_custom_call.1} parent=1 // pred_fallthru
      _
    // Predicated region
    $region26: #{tpu_custom_call.1} parent=1 // pred_check
      _
    $region27: #{tpu_custom_call.1} parent=1 // pred_check_branch
      %61 = sbr.rel (0) target = $region29
    $region28: #{tpu_custom_call.1} parent=1 // pred_region
      _
    $region29: #{tpu_custom_call.1} parent=1 // pred_fallthru
      _
    // Predicated region
    $region30: #{tpu_custom_call.1} parent=1 // pred_check
      _
    $region31: #{tpu_custom_call.1} parent=1 // pred_check_branch
      %63 = sbr.rel (0) target = $region33
    $region32: #{tpu_custom_call.1} parent=1 // pred_region
      _
    $region33: #{tpu_custom_call.1} parent=1 // pred_fallthru
      _
    // Predicated region
    $region34: #{tpu_custom_call.1} parent=1 // pred_check
      _
    $region35: #{tpu_custom_call.1} parent=1 // pred_check_branch
      %65 = sbr.rel (0) target = $region37
    $region36: #{tpu_custom_call.1} parent=1 // pred_region
      %66 = dma.done [#allocation4], 2048
    $region37: #{tpu_custom_call.1} parent=1 // pred_fallthru
      _
    // Predicated region
    $region38: #{tpu_custom_call.1} parent=1 // pred_check
      _
    $region39: #{tpu_custom_call.1} parent=1 // pred_check_branch
      %68 = sbr.rel (0) target = $region41
    $region40: #{tpu_custom_call.1} parent=1 // pred_region
      %69 = dma.done [#allocation7], 512
    $region41: #{tpu_custom_call.1} parent=1 // pred_fallthru
      _
    // Predicated region
    $region42: #{tpu_custom_call.1} parent=1 // pred_check
      _
    $region43: #{tpu_custom_call.1} parent=1 // pred_check_branch
      %71 = sbr.rel (0) target = $region45
    $region44: #{tpu_custom_call.1} parent=1 // pred_region
      %72 = dma.done [#allocation7], 4096
    $region45: #{tpu_custom_call.1} parent=1 // pred_fallthru
      _
    %v74 = vld [vmem:[#allocation3] sm:$0xff]
    %v75 = vld [vmem:[#allocation3 + $0x8] sm:$0xff]
    %v76 = vld [vmem:[#allocation3 + $0x10] sm:$0xff]
    %v77 = vld [vmem:[#allocation3 + $0x18] sm:$0xff]
    %v78 = vld [vmem:[#allocation3 + $0x20] sm:$0xff]
    %v79 = vld [vmem:[#allocation3 + $0x28] sm:$0xff]
    %v80 = vld [vmem:[#allocation3 + $0x30] sm:$0xff]
    %v81 = vld [vmem:[#allocation3 + $0x38] sm:$0xff]
    %v82 = vld [vmem:[#allocation3 + $0x40] sm:$0xff]
    %v83 = vld [vmem:[#allocation3 + $0x48] sm:$0xff]
    %v84 = vld [vmem:[#allocation3 + $0x50] sm:$0xff]
    %v85 = vld [vmem:[#allocation3 + $0x58] sm:$0xff]
    %v86 = vld [vmem:[#allocation3 + $0x60] sm:$0xff]
    %v87 = vld [vmem:[#allocation3 + $0x68] sm:$0xff]
    %v88 = vld [vmem:[#allocation3 + $0x70] sm:$0xff]
    %v89 = vld [vmem:[#allocation3 + $0x78] sm:$0xff]
    %v90 = vpack.c.bf16 %v75, %v74
    %v91 = vpack.c.bf16 %v77, %v76
    %v92 = vpack.c.bf16 %v79, %v78
    %v93 = vpack.c.bf16 %v81, %v80
    %v94 = vpack.c.bf16 %v83, %v82
    %v95 = vpack.c.bf16 %v85, %v84
    %v96 = vpack.c.bf16 %v87, %v86
    %v97 = vpack.c.bf16 %v89, %v88
    %v98 = vld [vmem:[#allocation6] sm:$0xff]
    %v99 = vld [vmem:[#allocation6 + $0x8] sm:$0xff]
    %v100 = vld [vmem:[#allocation6 + $0x10] sm:$0xff]
    %v101 = vld [vmem:[#allocation6 + $0x18] sm:$0xff]
    %v102 = vld [vmem:[%s3] sm:$0x3]
    %v104 = vlaneseq
    %v105 = vshrl.u32 %v104, 7
    %v106 = vsub.s32 0, %v105
    %v107 = vrot.slane %v102, %v106
    %v108 = vlaneseq
    %v109 = vshrl.u32 %v108, 7
    %v110 = vsub.s32 1, %v109
    %v111 = vrot.slane %v102, %v110
    %v118 = vunpack.c.l.b16 %v98
    %v119 = vunpack.c.h.b16 %v98
    %v120 = vunpack.c.l.b16 %v99
    %v121 = vunpack.c.h.b16 %v99
    %v122 = vunpack.c.l.b16 %v100
    %v123 = vunpack.c.h.b16 %v100
    %v124 = vunpack.c.l.b16 %v101
    %v125 = vunpack.c.h.b16 %v101
    %v126 = vpack.c.b16 %v120, %v118
    %v127 = vpack.c.b16 %v121, %v119
    %v128 = vpack.c.b16 %v124, %v122
    %v129 = vpack.c.b16 %v125, %v123
    %vm134 = vcmask 261120
    %v136 = vsel %vm134, %v90, 0
    %v139 = vsel %vm134, %v91, 0
    %v142 = vsel %vm134, %v92, 0
    %v145 = vsel %vm134, %v93, 0
    %v148 = vsel %vm134, %v94, 0
    %v151 = vsel %vm134, %v95, 0
    %v154 = vsel %vm134, %v96, 0
    %v157 = vsel %vm134, %v97, 0
    %159 = vmatprep.subr.bf16.mxu0 %v127
    %160 = vmatpush1.bf16.msra.mxu0 %v126
    %161 = vmatprep.subr.bf16.mxu0 %v129
    %162 = vmatpush1.bf16.msra.mxu0 %v128
    %163 = vmatprep.subr.bf16.mxu0 0
    %164 = vmatpush1.bf16.msra.mxu0 0
    %165 = vmatprep.subr.bf16.mxu0 0
    %166 = vmatpush1.bf16.msra.mxu0 0
    %167 = vmatprep.subr.bf16.mxu0 0
    %168 = vmatpush1.bf16.msra.mxu0 0
    %169 = vmatprep.subr.bf16.mxu0 0
    %170 = vmatpush1.bf16.msra.mxu0 0
    %171 = vmatprep.subr.bf16.mxu0 0
    %172 = vmatpush1.bf16.msra.mxu0 0
    %173 = vmatprep.subr.bf16.mxu0 0
    %174 = vmatpush1.bf16.msra.mxu0 0
    %175 = vmatprep.subr.bf16.mxu0 0
    %176 = vmatpush1.bf16.msra.mxu0 0
    %177 = vmatprep.subr.bf16.mxu0 0
    %178 = vmatpush1.bf16.msra.mxu0 0
    %179 = vmatprep.subr.bf16.mxu0 0
    %180 = vmatpush1.bf16.msra.mxu0 0
    %181 = vmatprep.subr.bf16.mxu0 0
    %182 = vmatpush1.bf16.msra.mxu0 0
    %183 = vmatprep.subr.bf16.mxu0 0
    %184 = vmatpush1.bf16.msra.mxu0 0
    %185 = vmatprep.subr.bf16.mxu0 0
    %186 = vmatpush1.bf16.msra.mxu0 0
    %187 = vmatprep.subr.bf16.mxu0 0
    %188 = vmatpush1.bf16.msra.mxu0 0
    %189 = vmatprep.subr.bf16.mxu0 0
    %190 = vmatpush1.bf16.msra.mxu0 0
    %191 = vmatprep.mubr.bf16.mxu0 0
    %192 = vmatmul.mubr.bf16.gmra.mrb[0].mxu0 %v136
    %v193 = vpop.f32.mrb[0].mxu0
    %v194 = vadd.f32 %v107, %v193
    %v195 = vpop.f32.mrb[0].mxu0
    %v196 = vadd.f32 %v111, %v195
    %v197 = vpop.f32.mrb[0].mxu0
    %v198 = vadd.f32 %v107, %v197
    %v199 = vpop.f32.mrb[0].mxu0
    %v200 = vadd.f32 %v111, %v199
    %201 = vmatprep.mubr.bf16.mxu0 0
    %202 = vmatmul.mubr.bf16.gmra.mrb[0].mxu0 %v139
    %v203 = vpop.f32.mrb[0].mxu0
    %v204 = vadd.f32 %v107, %v203
    %v205 = vpop.f32.mrb[0].mxu0
    %v206 = vadd.f32 %v111, %v205
    %v207 = vpop.f32.mrb[0].mxu0
    %v208 = vadd.f32 %v107, %v207
    %v209 = vpop.f32.mrb[0].mxu0
    %v210 = vadd.f32 %v111, %v209
    %211 = vmatprep.mubr.bf16.mxu0 0
    %212 = vmatmul.mubr.bf16.gmra.mrb[0].mxu0 %v142
    %v213 = vpop.f32.mrb[0].mxu0
    %v214 = vadd.f32 %v107, %v213
    %v215 = vpop.f32.mrb[0].mxu0
    %v216 = vadd.f32 %v111, %v215
    %v217 = vpop.f32.mrb[0].mxu0
    %v218 = vadd.f32 %v107, %v217
    %v219 = vpop.f32.mrb[0].mxu0
    %v220 = vadd.f32 %v111, %v219
    %221 = vmatprep.mubr.bf16.mxu0 0
    %222 = vmatmul.mubr.bf16.gmra.mrb[0].mxu0 %v145
    %v223 = vpop.f32.mrb[0].mxu0
    %v224 = vadd.f32 %v107, %v223
    %v225 = vpop.f32.mrb[0].mxu0
    %v226 = vadd.f32 %v111, %v225
    %v227 = vpop.f32.mrb[0].mxu0
    %v228 = vadd.f32 %v107, %v227
    %v229 = vpop.f32.mrb[0].mxu0
    %v230 = vadd.f32 %v111, %v229
    %231 = vmatprep.mubr.bf16.mxu0 0
    %232 = vmatmul.mubr.bf16.gmra.mrb[0].mxu0 %v148
    %v233 = vpop.f32.mrb[0].mxu0
    %v234 = vadd.f32 %v107, %v233
    %v235 = vpop.f32.mrb[0].mxu0
    %v236 = vadd.f32 %v111, %v235
    %v237 = vpop.f32.mrb[0].mxu0
    %v238 = vadd.f32 %v107, %v237
    %v239 = vpop.f32.mrb[0].mxu0
    %v240 = vadd.f32 %v111, %v239
    %241 = vmatprep.mubr.bf16.mxu0 0
    %242 = vmatmul.mubr.bf16.gmra.mrb[0].mxu0 %v151
    %v243 = vpop.f32.mrb[0].mxu0
    %v244 = vadd.f32 %v107, %v243
    %v245 = vpop.f32.mrb[0].mxu0
    %v246 = vadd.f32 %v111, %v245
    %v247 = vpop.f32.mrb[0].mxu0
    %v248 = vadd.f32 %v107, %v247
    %v249 = vpop.f32.mrb[0].mxu0
    %v250 = vadd.f32 %v111, %v249
    %251 = vmatprep.mubr.bf16.mxu0 0
    %252 = vmatmul.mubr.bf16.gmra.mrb[0].mxu0 %v154
    %v253 = vpop.f32.mrb[0].mxu0
    %v254 = vadd.f32 %v107, %v253
    %v255 = vpop.f32.mrb[0].mxu0
    %v256 = vadd.f32 %v111, %v255
    %v257 = vpop.f32.mrb[0].mxu0
    %v258 = vadd.f32 %v107, %v257
    %v259 = vpop.f32.mrb[0].mxu0
    %v260 = vadd.f32 %v111, %v259
    %261 = vmatprep.mubr.bf16.mxu0 0
    %262 = vmatmul.mubr.bf16.gmra.mrb[0].mxu0 %v157
    %v263 = vpop.f32.mrb[0].mxu0
    %v264 = vadd.f32 %v107, %v263
    %v265 = vpop.f32.mrb[0].mxu0
    %v266 = vadd.f32 %v111, %v265
    %v267 = vpop.f32.mrb[0].mxu0
    %v268 = vadd.f32 %v107, %v267
    %v269 = vpop.f32.mrb[0].mxu0
    %v270 = vadd.f32 %v111, %v269
    %271 = vdwg.mxu0
    %v272 = vmax.f32 %v194, 0.0
    %v273 = vmax.f32 %v196, 0.0
    %v274 = vmax.f32 %v198, 0.0
    %v275 = vmax.f32 %v200, 0.0
    %v276 = vmax.f32 %v204, 0.0
    %v277 = vmax.f32 %v206, 0.0
    %v278 = vmax.f32 %v208, 0.0
    %v279 = vmax.f32 %v210, 0.0
    %v280 = vmax.f32 %v214, 0.0
    %v281 = vmax.f32 %v216, 0.0
    %v282 = vmax.f32 %v218, 0.0
    %v283 = vmax.f32 %v220, 0.0
    %v284 = vmax.f32 %v224, 0.0
    %v285 = vmax.f32 %v226, 0.0
    %v286 = vmax.f32 %v228, 0.0
    %v287 = vmax.f32 %v230, 0.0
    %v288 = vmax.f32 %v234, 0.0
    %v289 = vmax.f32 %v236, 0.0
    %v290 = vmax.f32 %v238, 0.0
    %v291 = vmax.f32 %v240, 0.0
    %v292 = vmax.f32 %v244, 0.0
    %v293 = vmax.f32 %v246, 0.0
    %v294 = vmax.f32 %v248, 0.0
    %v295 = vmax.f32 %v250, 0.0
    %v296 = vmax.f32 %v254, 0.0
    %v297 = vmax.f32 %v256, 0.0
    %v298 = vmax.f32 %v258, 0.0
    %v299 = vmax.f32 %v260, 0.0
    %v300 = vmax.f32 %v264, 0.0
    %v301 = vmax.f32 %v266, 0.0
    %v302 = vmax.f32 %v268, 0.0
    %v303 = vmax.f32 %v270, 0.0
    %v304 = vpack.c.bf16 %v274, %v272
    %v305 = vpack.c.bf16 %v275, %v273
    %v306 = vpack.c.bf16 %v278, %v276
    %v307 = vpack.c.bf16 %v279, %v277
    %v308 = vpack.c.bf16 %v282, %v280
    %v309 = vpack.c.bf16 %v283, %v281
    %v310 = vpack.c.bf16 %v286, %v284
    %v311 = vpack.c.bf16 %v287, %v285
    %v312 = vpack.c.bf16 %v290, %v288
    %v313 = vpack.c.bf16 %v291, %v289
    %v314 = vpack.c.bf16 %v294, %v292
    %v315 = vpack.c.bf16 %v295, %v293
    %v316 = vpack.c.bf16 %v298, %v296
    %v317 = vpack.c.bf16 %v299, %v297
    %v318 = vpack.c.bf16 %v302, %v300
    %v319 = vpack.c.bf16 %v303, %v301
    %v320 = vld [vmem:[#allocation8] sm:$0xff]
    %v321 = vld [vmem:[#allocation8 + $0x8] sm:$0xff]
    %v322 = vld [vmem:[#allocation8 + $0x10] sm:$0xff]
    %v323 = vld [vmem:[#allocation8 + $0x18] sm:$0xff]
    %v324 = vld [vmem:[#allocation8 + $0x20] sm:$0xff]
    %v325 = vld [vmem:[#allocation8 + $0x28] sm:$0xff]
    %v326 = vld [vmem:[#allocation8 + $0x30] sm:$0xff]
    %v327 = vld [vmem:[#allocation8 + $0x38] sm:$0xff]
    %v328 = vld [vmem:[#allocation8 + $0x40] sm:$0xff]
    %v329 = vld [vmem:[#allocation8 + $0x48] sm:$0xff]
    %v330 = vld [vmem:[#allocation8 + $0x50] sm:$0xff]
    %v331 = vld [vmem:[#allocation8 + $0x58] sm:$0xff]
    %v332 = vld [vmem:[#allocation8 + $0x60] sm:$0xff]
    %v333 = vld [vmem:[#allocation8 + $0x68] sm:$0xff]
    %v334 = vld [vmem:[#allocation8 + $0x70] sm:$0xff]
    %v335 = vld [vmem:[#allocation8 + $0x78] sm:$0xff]
    %v336 = vld [vmem:[#allocation8 + $0x80] sm:$0xff]
    %v337 = vld [vmem:[#allocation8 + $0x88] sm:$0xff]
    %v338 = vld [vmem:[#allocation8 + $0x90] sm:$0xff]
    %v339 = vld [vmem:[#allocation8 + $0x98] sm:$0xff]
    %v340 = vld [vmem:[#allocation8 + $0xa0] sm:$0xff]
    %v341 = vld [vmem:[#allocation8 + $0xa8] sm:$0xff]
    %v342 = vld [vmem:[#allocation8 + $0xb0] sm:$0xff]
    %v343 = vld [vmem:[#allocation8 + $0xb8] sm:$0xff]
    %v344 = vld [vmem:[#allocation8 + $0xc0] sm:$0xff]
    %v345 = vld [vmem:[#allocation8 + $0xc8] sm:$0xff]
    %v346 = vld [vmem:[#allocation8 + $0xd0] sm:$0xff]
    %v347 = vld [vmem:[#allocation8 + $0xd8] sm:$0xff]
    %v348 = vld [vmem:[#allocation8 + $0xe0] sm:$0xff]
    %v349 = vld [vmem:[#allocation8 + $0xe8] sm:$0xff]
    %v350 = vld [vmem:[#allocation8 + $0xf0] sm:$0xff]
    %v351 = vld [vmem:[#allocation8 + $0xf8] sm:$0xff]
    %v352 = vld [vmem:[%s5] sm:$0x3]
    %v354 = vlaneseq
    %v355 = vshrl.u32 %v354, 7
    %v356 = vsub.s32 0, %v355
    %v357 = vrot.slane %v352, %v356
    %v358 = vlaneseq
    %v359 = vshrl.u32 %v358, 7
    %v360 = vsub.s32 1, %v359
    %v361 = vrot.slane %v352, %v360
    %v396 = vunpack.c.l.b16 %v320
    %v397 = vunpack.c.h.b16 %v320
    %v398 = vunpack.c.l.b16 %v321
    %v399 = vunpack.c.h.b16 %v321
    %v400 = vunpack.c.l.b16 %v322
    %v401 = vunpack.c.h.b16 %v322
    %v402 = vunpack.c.l.b16 %v323
    %v403 = vunpack.c.h.b16 %v323
    %v404 = vunpack.c.l.b16 %v324
    %v405 = vunpack.c.h.b16 %v324
    %v406 = vunpack.c.l.b16 %v325
    %v407 = vunpack.c.h.b16 %v325
    %v408 = vunpack.c.l.b16 %v326
    %v409 = vunpack.c.h.b16 %v326
    %v410 = vunpack.c.l.b16 %v327
    %v411 = vunpack.c.h.b16 %v327
    %v412 = vunpack.c.l.b16 %v328
    %v413 = vunpack.c.h.b16 %v328
    %v414 = vunpack.c.l.b16 %v329
    %v415 = vunpack.c.h.b16 %v329
    %v416 = vunpack.c.l.b16 %v330
    %v417 = vunpack.c.h.b16 %v330
    %v418 = vunpack.c.l.b16 %v331
    %v419 = vunpack.c.h.b16 %v331
    %v420 = vunpack.c.l.b16 %v332
    %v421 = vunpack.c.h.b16 %v332
    %v422 = vunpack.c.l.b16 %v333
    %v423 = vunpack.c.h.b16 %v333
    %v424 = vunpack.c.l.b16 %v334
    %v425 = vunpack.c.h.b16 %v334
    %v426 = vunpack.c.l.b16 %v335
    %v427 = vunpack.c.h.b16 %v335
    %v428 = vunpack.c.l.b16 %v336
    %v429 = vunpack.c.h.b16 %v336
    %v430 = vunpack.c.l.b16 %v337
    %v431 = vunpack.c.h.b16 %v337
    %v432 = vunpack.c.l.b16 %v338
    %v433 = vunpack.c.h.b16 %v338
    %v434 = vunpack.c.l.b16 %v339
    %v435 = vunpack.c.h.b16 %v339
    %v436 = vunpack.c.l.b16 %v340
    %v437 = vunpack.c.h.b16 %v340
    %v438 = vunpack.c.l.b16 %v341
    %v439 = vunpack.c.h.b16 %v341
    %v440 = vunpack.c.l.b16 %v342
    %v441 = vunpack.c.h.b16 %v342
    %v442 = vunpack.c.l.b16 %v343
    %v443 = vunpack.c.h.b16 %v343
    %v444 = vunpack.c.l.b16 %v344
    %v445 = vunpack.c.h.b16 %v344
    %v446 = vunpack.c.l.b16 %v345
    %v447 = vunpack.c.h.b16 %v345
    %v448 = vunpack.c.l.b16 %v346
    %v449 = vunpack.c.h.b16 %v346
    %v450 = vunpack.c.l.b16 %v347
    %v451 = vunpack.c.h.b16 %v347
    %v452 = vunpack.c.l.b16 %v348
    %v453 = vunpack.c.h.b16 %v348
    %v454 = vunpack.c.l.b16 %v349
    %v455 = vunpack.c.h.b16 %v349
    %v456 = vunpack.c.l.b16 %v350
    %v457 = vunpack.c.h.b16 %v350
    %v458 = vunpack.c.l.b16 %v351
    %v459 = vunpack.c.h.b16 %v351
    %v460 = vpack.c.b16 %v398, %v396
    %v461 = vpack.c.b16 %v399, %v397
    %v462 = vpack.c.b16 %v402, %v400
    %v463 = vpack.c.b16 %v403, %v401
    %v464 = vpack.c.b16 %v406, %v404
    %v465 = vpack.c.b16 %v407, %v405
    %v466 = vpack.c.b16 %v410, %v408
    %v467 = vpack.c.b16 %v411, %v409
    %v468 = vpack.c.b16 %v414, %v412
    %v469 = vpack.c.b16 %v415, %v413
    %v470 = vpack.c.b16 %v418, %v416
    %v471 = vpack.c.b16 %v419, %v417
    %v472 = vpack.c.b16 %v422, %v420
    %v473 = vpack.c.b16 %v423, %v421
    %v474 = vpack.c.b16 %v426, %v424
    %v475 = vpack.c.b16 %v427, %v425
    %v476 = vpack.c.b16 %v430, %v428
    %v477 = vpack.c.b16 %v431, %v429
    %v478 = vpack.c.b16 %v434, %v432
    %v479 = vpack.c.b16 %v435, %v433
    %v480 = vpack.c.b16 %v438, %v436
    %v481 = vpack.c.b16 %v439, %v437
    %v482 = vpack.c.b16 %v442, %v440
    %v483 = vpack.c.b16 %v443, %v441
    %v484 = vpack.c.b16 %v446, %v444
    %v485 = vpack.c.b16 %v447, %v445
    %v486 = vpack.c.b16 %v450, %v448
    %v487 = vpack.c.b16 %v451, %v449
    %v488 = vpack.c.b16 %v454, %v452
    %v489 = vpack.c.b16 %v455, %v453
    %v490 = vpack.c.b16 %v458, %v456
    %v491 = vpack.c.b16 %v459, %v457
    %524 = vmatprep.subr.bf16.mxu0 %v461
    %525 = vmatpush1.bf16.msra.mxu0 %v460
    %526 = vmatprep.subr.bf16.mxu0 %v463
    %527 = vmatpush1.bf16.msra.mxu0 %v462
    %528 = vmatprep.subr.bf16.mxu0 %v465
    %529 = vmatpush1.bf16.msra.mxu0 %v464
    %530 = vmatprep.subr.bf16.mxu0 %v467
    %531 = vmatpush1.bf16.msra.mxu0 %v466
    %532 = vmatprep.subr.bf16.mxu0 %v469
    %533 = vmatpush1.bf16.msra.mxu0 %v468
    %534 = vmatprep.subr.bf16.mxu0 %v471
    %535 = vmatpush1.bf16.msra.mxu0 %v470
    %536 = vmatprep.subr.bf16.mxu0 %v473
    %537 = vmatpush1.bf16.msra.mxu0 %v472
    %538 = vmatprep.subr.bf16.mxu0 %v475
    %539 = vmatpush1.bf16.msra.mxu0 %v474
    %540 = vmatprep.subr.bf16.mxu0 %v477
    %541 = vmatpush1.bf16.msra.mxu0 %v476
    %542 = vmatprep.subr.bf16.mxu0 %v479
    %543 = vmatpush1.bf16.msra.mxu0 %v478
    %544 = vmatprep.subr.bf16.mxu0 %v481
    %545 = vmatpush1.bf16.msra.mxu0 %v480
    %546 = vmatprep.subr.bf16.mxu0 %v483
    %547 = vmatpush1.bf16.msra.mxu0 %v482
    %548 = vmatprep.subr.bf16.mxu0 %v485
    %549 = vmatpush1.bf16.msra.mxu0 %v484
    %550 = vmatprep.subr.bf16.mxu0 %v487
    %551 = vmatpush1.bf16.msra.mxu0 %v486
    %552 = vmatprep.subr.bf16.mxu0 %v489
    %553 = vmatpush1.bf16.msra.mxu0 %v488
    %554 = vmatprep.subr.bf16.mxu0 %v491
    %555 = vmatpush1.bf16.msra.mxu0 %v490
    %556 = vmatprep.mubr.bf16.mxu0 %v305
    %557 = vmatmul.mubr.bf16.gmra.mrb[0].mxu0 %v304
    %v558 = vpop.f32.mrb[0].mxu0
    %v559 = vadd.f32 %v357, %v558
    %v560 = vpop.f32.mrb[0].mxu0
    %v561 = vadd.f32 %v361, %v560
    %v562 = vpop.f32.mrb[0].mxu0
    %v563 = vadd.f32 %v357, %v562
    %v564 = vpop.f32.mrb[0].mxu0
    %v565 = vadd.f32 %v361, %v564
    %566 = vmatprep.mubr.bf16.mxu0 %v307
    %567 = vmatmul.mubr.bf16.gmra.mrb[0].mxu0 %v306
    %v568 = vpop.f32.mrb[0].mxu0
    %v569 = vadd.f32 %v357, %v568
    %v570 = vpop.f32.mrb[0].mxu0
    %v571 = vadd.f32 %v361, %v570
    %v572 = vpop.f32.mrb[0].mxu0
    %v573 = vadd.f32 %v357, %v572
    %v574 = vpop.f32.mrb[0].mxu0
    %v575 = vadd.f32 %v361, %v574
    %576 = vmatprep.mubr.bf16.mxu0 %v309
    %577 = vmatmul.mubr.bf16.gmra.mrb[0].mxu0 %v308
    %v578 = vpop.f32.mrb[0].mxu0
    %v579 = vadd.f32 %v357, %v578
    %v580 = vpop.f32.mrb[0].mxu0
    %v581 = vadd.f32 %v361, %v580
    %v582 = vpop.f32.mrb[0].mxu0
    %v583 = vadd.f32 %v357, %v582
    %v584 = vpop.f32.mrb[0].mxu0
    %v585 = vadd.f32 %v361, %v584
    %586 = vmatprep.mubr.bf16.mxu0 %v311
    %587 = vmatmul.mubr.bf16.gmra.mrb[0].mxu0 %v310
    %v588 = vpop.f32.mrb[0].mxu0
    %v589 = vadd.f32 %v357, %v588
    %v590 = vpop.f32.mrb[0].mxu0
    %v591 = vadd.f32 %v361, %v590
    %v592 = vpop.f32.mrb[0].mxu0
    %v593 = vadd.f32 %v357, %v592
    %v594 = vpop.f32.mrb[0].mxu0
    %v595 = vadd.f32 %v361, %v594
    %596 = vmatprep.mubr.bf16.mxu0 %v313
    %597 = vmatmul.mubr.bf16.gmra.mrb[0].mxu0 %v312
    %v598 = vpop.f32.mrb[0].mxu0
    %v599 = vadd.f32 %v357, %v598
    %v600 = vpop.f32.mrb[0].mxu0
    %v601 = vadd.f32 %v361, %v600
    %v602 = vpop.f32.mrb[0].mxu0
    %v603 = vadd.f32 %v357, %v602
    %v604 = vpop.f32.mrb[0].mxu0
    %v605 = vadd.f32 %v361, %v604
    %606 = vmatprep.mubr.bf16.mxu0 %v315
    %607 = vmatmul.mubr.bf16.gmra.mrb[0].mxu0 %v314
    %v608 = vpop.f32.mrb[0].mxu0
    %v609 = vadd.f32 %v357, %v608
    %v610 = vpop.f32.mrb[0].mxu0
    %v611 = vadd.f32 %v361, %v610
    %v612 = vpop.f32.mrb[0].mxu0
    %v613 = vadd.f32 %v357, %v612
    %v614 = vpop.f32.mrb[0].mxu0
    %v615 = vadd.f32 %v361, %v614
    %616 = vmatprep.mubr.bf16.mxu0 %v317
    %617 = vmatmul.mubr.bf16.gmra.mrb[0].mxu0 %v316
    %v618 = vpop.f32.mrb[0].mxu0
    %v619 = vadd.f32 %v357, %v618
    %v620 = vpop.f32.mrb[0].mxu0
    %v621 = vadd.f32 %v361, %v620
    %v622 = vpop.f32.mrb[0].mxu0
    %v623 = vadd.f32 %v357, %v622
    %v624 = vpop.f32.mrb[0].mxu0
    %v625 = vadd.f32 %v361, %v624
    %626 = vmatprep.mubr.bf16.mxu0 %v319
    %627 = vmatmul.mubr.bf16.gmra.mrb[0].mxu0 %v318
    %v628 = vpop.f32.mrb[0].mxu0
    %v629 = vadd.f32 %v357, %v628
    %v630 = vpop.f32.mrb[0].mxu0
    %v631 = vadd.f32 %v361, %v630
    %v632 = vpop.f32.mrb[0].mxu0
    %v633 = vadd.f32 %v357, %v632
    %v634 = vpop.f32.mrb[0].mxu0
    %v635 = vadd.f32 %v361, %v634
    %636 = vdwg.mxu0
    %v637 = vmax.f32 %v559, 0.0
    %v638 = vmax.f32 %v561, 0.0
    %v639 = vmax.f32 %v563, 0.0
    %v640 = vmax.f32 %v565, 0.0
    %v641 = vmax.f32 %v569, 0.0
    %v642 = vmax.f32 %v571, 0.0
    %v643 = vmax.f32 %v573, 0.0
    %v644 = vmax.f32 %v575, 0.0
    %v645 = vmax.f32 %v579, 0.0
    %v646 = vmax.f32 %v581, 0.0
    %v647 = vmax.f32 %v583, 0.0
    %v648 = vmax.f32 %v585, 0.0
    %v649 = vmax.f32 %v589, 0.0
    %v650 = vmax.f32 %v591, 0.0
    %v651 = vmax.f32 %v593, 0.0
    %v652 = vmax.f32 %v595, 0.0
    %v653 = vmax.f32 %v599, 0.0
    %v654 = vmax.f32 %v601, 0.0
    %v655 = vmax.f32 %v603, 0.0
    %v656 = vmax.f32 %v605, 0.0
    %v657 = vmax.f32 %v609, 0.0
    %v658 = vmax.f32 %v611, 0.0
    %v659 = vmax.f32 %v613, 0.0
    %v660 = vmax.f32 %v615, 0.0
    %v661 = vmax.f32 %v619, 0.0
    %v662 = vmax.f32 %v621, 0.0
    %v663 = vmax.f32 %v623, 0.0
    %v664 = vmax.f32 %v625, 0.0
    %v665 = vmax.f32 %v629, 0.0
    %v666 = vmax.f32 %v631, 0.0
    %v667 = vmax.f32 %v633, 0.0
    %v668 = vmax.f32 %v635, 0.0
    %v669 = vld [vmem:[%s6] sm:$0xff]
    %v670 = vpack.c.bf16 %v639, %v637
    %v671 = vpack.c.bf16 %v640, %v638
    %v672 = vpack.c.bf16 %v643, %v641
    %v673 = vpack.c.bf16 %v644, %v642
    %v674 = vpack.c.bf16 %v647, %v645
    %v675 = vpack.c.bf16 %v648, %v646
    %v676 = vpack.c.bf16 %v651, %v649
    %v677 = vpack.c.bf16 %v652, %v650
    %v678 = vpack.c.bf16 %v655, %v653
    %v679 = vpack.c.bf16 %v656, %v654
    %v680 = vpack.c.bf16 %v659, %v657
    %v681 = vpack.c.bf16 %v660, %v658
    %v682 = vpack.c.bf16 %v663, %v661
    %v683 = vpack.c.bf16 %v664, %v662
    %v684 = vpack.c.bf16 %v667, %v665
    %v685 = vpack.c.bf16 %v668, %v666
    %v687 = vunpack.c.l.b16 %v669
    %v688 = vunpack.c.h.b16 %v669
    %v689 = vpack.c.b16 %v687, %v687
    %v690 = vpack.c.b16 %v688, %v688
    %693 = vmatprep.subr.bf16.mxu0 %v671
    %694 = vmatpush1.bf16.xpose.msra.mxu0 %v670
    %695 = vmatprep.subr.bf16.mxu0 %v673
    %696 = vmatpush1.bf16.xpose.msra.mxu0 %v672
    %697 = vmatprep.subr.bf16.mxu0 %v675
    %698 = vmatpush1.bf16.xpose.msra.mxu0 %v674
    %699 = vmatprep.subr.bf16.mxu0 %v677
    %700 = vmatpush1.bf16.xpose.msra.mxu0 %v676
    %701 = vmatprep.subr.bf16.mxu0 %v679
    %702 = vmatpush1.bf16.xpose.msra.mxu0 %v678
    %703 = vmatprep.subr.bf16.mxu0 %v681
    %704 = vmatpush1.bf16.xpose.msra.mxu0 %v680
    %705 = vmatprep.subr.bf16.mxu0 %v683
    %706 = vmatpush1.bf16.xpose.msra.mxu0 %v682
    %707 = vmatprep.subr.bf16.mxu0 %v685
    %708 = vmatpush1.bf16.xpose.msra.mxu0 %v684
    %709 = vmatprep.subr.bf16.mxu0 0
    %710 = vmatpush1.bf16.xpose.msra.mxu0 0
    %711 = vmatprep.subr.bf16.mxu0 0
    %712 = vmatpush1.bf16.xpose.msra.mxu0 0
    %713 = vmatprep.subr.bf16.mxu0 0
    %714 = vmatpush1.bf16.xpose.msra.mxu0 0
    %715 = vmatprep.subr.bf16.mxu0 0
    %716 = vmatpush1.bf16.xpose.msra.mxu0 0
    %717 = vmatprep.subr.bf16.mxu0 0
    %718 = vmatpush1.bf16.xpose.msra.mxu0 0
    %719 = vmatprep.subr.bf16.mxu0 0
    %720 = vmatpush1.bf16.xpose.msra.mxu0 0
    %721 = vmatprep.subr.bf16.mxu0 0
    %722 = vmatpush1.bf16.xpose.msra.mxu0 0
    %723 = vmatprep.subr.bf16.mxu0 0
    %724 = vmatpush1.bf16.xpose.msra.mxu0 0
    %725 = vmatprep.mubr.bf16.mxu0 %v690
    %726 = vmatmul.mubr.bf16.gmra.mrb[0].mxu0 %v689
    %v727 = vpop.f32.mrb[0].mxu0
    %v728 = vadd.f32 0.0, %v727
    %v729 = vpop.f32.mrb[0].mxu0
    %v730 = vpop.f32.mrb[0].mxu0
    %v731 = vpop.f32.mrb[0].mxu0
    %732 = vdwg.mxu0
    %v733 = vld [vmem:[#allocation2] sm:$0x1]
    %735 = vset.pattern.permute.xlu0 0
    %736 = vperm.xlu0 %735, %v733
    %v737 = vpop.permute.xlu0 %736
    %v739 = vlaneseq
    %v740 = vshrl.u32 %v739, 7
    %v741 = vsub.s32 0, %v740
    %v742 = vrot.slane %v737, %v741
    %v743 = vadd.f32 %v728, %v742
    %v744 = vld [vmem:[%s1] sm:$0x1]
    %v745 = vsub.f32 %v743, %v744
    %p746 = scmp.eq.s32.totalorder 0, 0
    // Predicated region
    $region46: #{tpu_custom_call.1} parent=1 // pred_check
      %p747 = pneg %p746
    $region47: #{tpu_custom_call.1} parent=1 // pred_check_branch
      %749 = sbr.rel (%p747) target = $region49
    $region48: #{tpu_custom_call.1} parent=1 // pred_region
      %v750 = vlaneseq
      %v751 = vand.u32 %v750, 127
      %vm752 = vcmp.lt.s32.totalorder %v751, 16
      %v753 = vsel %vm752, %v745, 0.0
      %v754 = vmul.f32 %v753, %v753
      %vm755 = vcmask 1040384
      %v756 = vsel %vm755, %v754, 0.0
      %757 = vadd.xlane.f32.xlu0 %v756
      %v758 = vpop.xlane.xlu0 %757
      %v759 = vrot.slane %v758, 4
      %v760 = vadd.f32 %v758, %v759
      %v761 = vrot.slane %v760, 2
      %v762 = vadd.f32 %v760, %v761
      %v763 = vrot.slane %v762, 1
      %v764 = vadd.f32 %v762, %v763
      %s765 = vtos %v764
      %v766 = vstv %s765
      %vm767 = vcmask 0
      %768 = vst.msk [vmem:[#allocation9] sm:$0x1] %vm767, %v766
    $region49: #{tpu_custom_call.1} parent=1 // pred_fallthru
      _
    %p769 = scmp.ne.s32.totalorder 0, 0
    // Predicated region
    $region50: #{tpu_custom_call.1} parent=1 // pred_check
      %p770 = pneg %p769
    $region51: #{tpu_custom_call.1} parent=1 // pred_check_branch
      %772 = sbr.rel (%p770) target = $region53
    $region52: #{tpu_custom_call.1} parent=1 // pred_region
      %v773 = vmul.f32 %v745, %v745
      %vm774 = vcmask 1040384
      %v775 = vsel %vm774, %v773, 0.0
      %776 = vadd.xlane.f32.xlu0 %v775
      %v777 = vpop.xlane.xlu0 %776
      %v778 = vrot.slane %v777, 4
      %v779 = vadd.f32 %v777, %v778
      %v780 = vrot.slane %v779, 2
      %v781 = vadd.f32 %v779, %v780
      %v782 = vrot.slane %v781, 1
      %v783 = vadd.f32 %v781, %v782
      %s784 = vtos %v783
      %v785 = vstv %s784
      %vm786 = vcmask 0
      %787 = vst.msk [vmem:[#allocation9] sm:$0x1] %vm786, %v785
    $region53: #{tpu_custom_call.1} parent=1 // pred_fallthru
      _
    // Predicated region
    $region54: #{tpu_custom_call.1} parent=1 // pred_check
      _
    $region55: #{tpu_custom_call.1} parent=1 // pred_check_branch
      %789 = sbr.rel (0) target = $region57
    $region56: #{tpu_custom_call.1} parent=1 // pred_region
      %s791 = ssub.s32 16, 16
      %792 = vsyncadd [#allocation5], %s791
      %s794 = sshll.u32 [#allocation9], 4
      %s795 = int_to_ptr.vmem [resolvable:$true] %s794
      %797 = dma.vmem_to_hbm [thread:$0]  %s795, 16, %s8, [#allocation5]
    $region57: #{tpu_custom_call.1} parent=1 // pred_fallthru
      _
    // Predicated region
    $region58: #{tpu_custom_call.1} parent=1 // pred_check
      _
    $region59: #{tpu_custom_call.1} parent=1 // pred_check_branch
      %799 = sbr.rel (0) target = $region61
    $region60: #{tpu_custom_call.1} parent=1 // pred_region
      %800 = dma.done [#allocation5], 16
    $region61: #{tpu_custom_call.1} parent=1 // pred_fallthru
      _
    %801 = vsyncpa [#allocation4], 1
    %802 = vsyncpa [#allocation7], 1
    %803 = vsyncpa [#allocation5], 1

</llo_original>
